<compile_context>
chip_gen: v6e
topology: v6e:2x2x1
jax: 0.10.0
libtpu: 0.0.40
codegen_flags: <defaults>
</compile_context>

<pallas_src>
import functools

import jax
import jax.numpy as jnp
from jax.experimental import pallas as pl
from jax.experimental.pallas import tpu as pltpu

# bf16 MXU operands + bf16 inter-phase activation (v6e/v7x MXU is bf16-native;
# halving the intermediate also helps HBM-bound v5e). f32 accumulation.
MXU_DTYPE = jnp.bfloat16
CONV_STORE_DTYPE = jnp.bfloat16


def _conv_stats_kernel(a_ref, w_ref, conv_ref, stats_ref):
    """Per row-tile: fused 3x3 conv (single MXU matmul) + BN partial sums.

    a_ref:     [TILE_M, 3*(W+2)*Cin]   kh-folded padded input rows (bf16)
    w_ref:     [3*(W+2)*Cin, W*Cout]   kh-dense / kw-Toeplitz weight (bf16)
    conv_ref:  [TILE_M, W*Cout]        conv rows of this tile (bf16, lane-dense)
    stats_ref: [1, 2, W*Cout]          per-tile [row-sum, row-sum-of-squares] (f32)
    """
    conv = jnp.dot(a_ref[...], w_ref[...], preferred_element_type=jnp.float32)
    conv_ref[...] = conv.astype(conv_ref.dtype)
    # One-pass BN partials in f32; cross-tile fold + E[x^2]-E[x]^2 in wrapper.
    stats_ref[0, 0:1, :] = jnp.sum(conv, axis=0, keepdims=True)
    stats_ref[0, 1:2, :] = jnp.sum(conv * conv, axis=0, keepdims=True)


def _bn_relu_kernel(conv_ref, ss_ref, out_ref):
    """y = relu(conv * scale + shift); scale/shift pre-tiled to W*Cout lanes."""
    y = conv_ref[...].astype(jnp.float32) * ss_ref[0:1, :] + ss_ref[1:2, :]
    out_ref[...] = jnp.maximum(y, 0.0).astype(out_ref.dtype)


def _pick_row_tile(total_rows, max_tile):
    """Largest row tile <= max_tile that evenly divides total_rows."""
    if total_rows <= max_tile:
        return total_rows
    t = max_tile
    while total_rows % t:
        t -= 8
    return t


@functools.partial(jax.jit, static_argnames=("out_layout",))
def gated_conv_forward(x_nchw, weight_oihw, out_layout="NCHW"):
    """x_nchw: [N, Cin, H, W], weight_oihw: [Cout, Cin, 3, 3].

    Returns [N, Cout, H, W] (out_layout="NCHW", default, matches the module)
    or [N, H, W, Cout] (out_layout="NHWC", skips the final transpose pass).
    """
    N, Cin, H, W = x_nchw.shape
    Cout = weight_oihw.shape[0]
    total_rows = N * H
    assert total_rows % 8 == 0, "row tiling expects N*H to be a multiple of 8"
    row_w = (W + 2) * Cin              # one padded image row on the lane axis
    k_dim = 3 * row_w                  # kh folded onto the contraction axis
    lanes = W * Cout                   # lane-dense output width (128 at test shape)

    # ---- layout plumbing (fused by XLA inside this jit) --------------------
    # NCHW -> NHWC, spatial pad by 1, flatten (W+2, Cin) onto lanes.
    x_nhwc = jnp.transpose(x_nchw, (0, 2, 3, 1))
    x_pad = jnp.pad(x_nhwc, ((0, 0), (1, 1), (1, 1), (0, 0)))
    x_pad = x_pad.reshape(N, H + 2, row_w)
    # kh -> K axis: a_all[n*H + h, kh*row_w + j] = x_pad[n, h + kh, j]
    a_all = jnp.concatenate(
        [x_pad[:, 0:H, :], x_pad[:, 1:H + 1, :], x_pad[:, 2:H + 2, :]], axis=-1
    ).reshape(total_rows, k_dim).astype(MXU_DTYPE)

    # Weight: dense in kh, Toeplitz-expanded in kw.
    #   w_all[kh*row_w + wp*Cin + ci, w*Cout + co]
    #       = conv_w[co, ci, kh, wp - w]  if 0 <= wp - w < 3 else 0
    w_k = jnp.transpose(weight_oihw, (2, 3, 1, 0))          # [3(kh),3(kw),Cin,Cout]
    wp = jnp.arange(W + 2)[:, None]
    wo = jnp.arange(W)[None, :]
    kw_off = wp - wo                                         # [W+2, W]
    valid = ((kw_off >= 0) & (kw_off < 3)).astype(w_k.dtype)
    toe = w_k[:, jnp.clip(kw_off, 0, 2), :, :]               # [3, W+2, W, Cin, Cout]
    toe = toe * valid[None, :, :, None, None]
    toe = jnp.transpose(toe, (0, 1, 3, 2, 4))                # [3, W+2, Cin, W, Cout]
    w_all = toe.reshape(k_dim, lanes).astype(MXU_DTYPE)

    # ---- phase 1: conv (one matmul per tile) + per-tile BN partials --------
    tm = _pick_row_tile(total_rows, 256)
    n_tiles = total_rows // tm
    conv_flat, stats = pl.pallas_call(
        _conv_stats_kernel,
        out_shape=(
            jax.ShapeDtypeStruct((total_rows, lanes), CONV_STORE_DTYPE),
            jax.ShapeDtypeStruct((n_tiles, 2, lanes), jnp.float32),
        ),
        grid=(n_tiles,),
        in_specs=[
            pl.BlockSpec((tm, k_dim), lambda i: (i, 0)),
            pl.BlockSpec((k_dim, lanes), lambda i: (0, 0)),
        ],
        out_specs=(
            pl.BlockSpec((tm, lanes), lambda i: (i, 0)),
            pl.BlockSpec((1, 2, lanes), lambda i: (i, 0, 0)),
        ),
        compiler_params=pltpu.CompilerParams(
            dimension_semantics=("parallel",),
            vmem_limit_bytes=48 * 1024 * 1024),
    )(a_all, w_all)

    # ---- tiny cross-tile BN fold (n_tiles x 2 x Cout values) ---------------
    st = stats.reshape(n_tiles, 2, W, Cout)
    cnt = float(N * H * W)
    mean = jnp.sum(st[:, 0], axis=(0, 1)) / cnt                # [Cout]
    var = jnp.sum(st[:, 1], axis=(0, 1)) / cnt - mean * mean   # biased, one-pass
    rstd = jax.lax.rsqrt(var + 1e-5)
    scale_shift = jnp.stack(
        [jnp.tile(rstd, W), jnp.tile(-mean * rstd, W)], axis=0)  # [2, W*Cout] f32

    # ---- phase 2: normalize + ReLU (big lane-dense blocks) -----------------
    tm2 = _pick_row_tile(total_rows, 512)
    out_flat = pl.pallas_call(
        _bn_relu_kernel,
        out_shape=jax.ShapeDtypeStruct((total_rows, lanes), x_nchw.dtype),
        grid=(total_rows // tm2,),
        in_specs=[
            pl.BlockSpec((tm2, lanes), lambda i: (i, 0)),
            pl.BlockSpec((2, lanes), lambda i: (0, 0)),
        ],
        out_specs=pl.BlockSpec((tm2, lanes), lambda i: (i, 0)),
        compiler_params=pltpu.CompilerParams(
            dimension_semantics=("parallel",),
            vmem_limit_bytes=48 * 1024 * 1024),
    )(conv_flat, scale_shift)

    out = out_flat.reshape(N, H, W, Cout)
    if out_layout == "NHWC":
        return out
    return jnp.transpose(out, (0, 3, 1, 2))


if __name__ == "__main__":
    key = jax.random.PRNGKey(0)
    k_x, k_w = jax.random.split(key)

    # Small shapes consistent with the module: batch=2, in_channels=4,
    # out_channels=8, spatial=16, kernel_size=3, stride=1, padding=1.
    N, Cin, Cout, H, W = 2, 4, 8, 16, 16

    x = jax.random.normal(k_x, (N, Cin, H, W), dtype=jnp.float32)
    fan_in = Cin * 3 * 3
    bound = (1.0 / fan_in) ** 0.5
    conv_w = jax.random.uniform(
        k_w, (Cout, Cin, 3, 3), minval=-bound, maxval=bound, dtype=jnp.float32)

    out = gated_conv_forward(x, conv_w)
    out = jax.block_until_ready(out)

    # Reference (plain JAX): conv -> BN batch stats -> ReLU. The kernel uses
    # bf16 MXU operands by design, so the reference applies the same input /
    # weight quantization; remaining differences are the bf16 inter-phase
    # intermediate and accumulation order.
    xq = x.astype(jnp.bfloat16).astype(jnp.float32)
    wq = conv_w.astype(jnp.bfloat16).astype(jnp.float32)
    ref = jax.lax.conv_general_dilated(
        xq, wq, window_strides=(1, 1), padding=((1, 1), (1, 1)),
        dimension_numbers=("NCHW", "OIHW", "NCHW"))
    mean = jnp.mean(ref, axis=(0, 2, 3), keepdims=True)
    var = jnp.mean((ref - mean) ** 2, axis=(0, 2, 3), keepdims=True)
    ref = jnp.maximum((ref - mean) * jax.lax.rsqrt(var + 1e-5), 0.0)
    assert jnp.allclose(out, ref, atol=1e-2, rtol=1e-2), "mismatch vs reference"

    print("KERNEL_OK")
</pallas_src>

<mosaic_0001>
module attributes {stable_mosaic.version = 11 : i64} {
  func.func @_conv_stats_kernel(%arg0: i32, %arg1: memref<32x216xbf16, #tpu.memory_space<vmem>>, %arg2: memref<216x128xbf16, #tpu.memory_space<vmem>>, %arg3: memref<32x128xbf16, #tpu.memory_space<vmem>>, %arg4: memref<1x2x128xf32, #tpu.memory_space<vmem>>) attributes {dimension_semantics = [#tpu.dimension_semantics<parallel>], iteration_bounds = array<i64: 1>, scalar_prefetch = 0 : i64, scratch_operands = 0 : i64, tpu.core_type = #tpu.core_type<tc>, window_params = [{transform_indices = @transform_0, window_bounds = array<i64: 32, 216>}, {pipeline_mode = #tpu.pipeline_mode<synchronous>, transform_indices = @transform_1, window_bounds = array<i64: 216, 128>}, {transform_indices = @transform_2, window_bounds = array<i64: 32, 128>}, {transform_indices = @transform_3, window_bounds = array<i64: 1, 2, 128>}]} {
    %c0 = arith.constant 0 : index
    %c0_0 = arith.constant 0 : index
    %0 = vector.load %arg1[%c0, %c0_0] : memref<32x216xbf16, #tpu.memory_space<vmem>>, vector<32x216xbf16>
    %c0_1 = arith.constant 0 : index
    %c0_2 = arith.constant 0 : index
    %1 = vector.load %arg2[%c0_1, %c0_2] : memref<216x128xbf16, #tpu.memory_space<vmem>>, vector<216x128xbf16>
    %cst = arith.constant dense<0.000000e+00> : vector<32x128xf32>
    %2 = tpu.matmul %0, %1, %cst {dimension_numbers = #tpu.dot_dimension_numbers<[1], [0], [0], [1], [0, 0, 1, 1], [], []>} : vector<32x216xbf16>, vector<216x128xbf16>, vector<32x128xf32> -> vector<32x128xf32>
    %3 = arith.truncf %2 : vector<32x128xf32> to vector<32x128xbf16>
    %c0_3 = arith.constant 0 : index
    %c0_4 = arith.constant 0 : index
    %4 = vector.load %arg3[%c0_3, %c0_4] : memref<32x128xbf16, #tpu.memory_space<vmem>>, vector<32x128xbf16>
    tpu.vector_store %arg3[%c0_3, %c0_4], %3 {strides = array<i32>} : memref<32x128xbf16, #tpu.memory_space<vmem>>, vector<32x128xbf16>,
    %cst_5 = arith.constant dense<0.000000e+00> : vector<128xf32>
    %5 = vector.multi_reduction <add>, %2, %cst_5 [0] : vector<32x128xf32> to vector<128xf32>
    %6 = vector.shape_cast %5 : vector<128xf32> to vector<1x128xf32>
    %c0_6 = arith.constant 0 : index
    %c0_7 = arith.constant 0 : index
    %c0_8 = arith.constant 0 : index
    %7 = vector.load %arg4[%c0_6, %c0_7, %c0_8] : memref<1x2x128xf32, #tpu.memory_space<vmem>>, vector<1x1x128xf32>
    %8 = vector.shape_cast %7 : vector<1x1x128xf32> to vector<1x128xf32>
    %9 = vector.shape_cast %6 : vector<1x128xf32> to vector<1x1x128xf32>
    tpu.vector_store %arg4[%c0_6, %c0_7, %c0_8], %9 {strides = array<i32>} : memref<1x2x128xf32, #tpu.memory_space<vmem>>, vector<1x1x128xf32>,
    %10 = arith.mulf %2, %2 : vector<32x128xf32>
    %cst_9 = arith.constant dense<0.000000e+00> : vector<128xf32>
    %11 = vector.multi_reduction <add>, %10, %cst_9 [0] : vector<32x128xf32> to vector<128xf32>
    %12 = vector.shape_cast %11 : vector<128xf32> to vector<1x128xf32>
    %c0_10 = arith.constant 0 : index
    %c1 = arith.constant 1 : index
    %c0_11 = arith.constant 0 : index
    %13 = vector.load %arg4[%c0_10, %c1, %c0_11] : memref<1x2x128xf32, #tpu.memory_space<vmem>>, vector<1x1x128xf32>
    %14 = vector.shape_cast %13 : vector<1x1x128xf32> to vector<1x128xf32>
    %15 = vector.shape_cast %12 : vector<1x128xf32> to vector<1x1x128xf32>
    tpu.vector_store %arg4[%c0_10, %c1, %c0_11], %15 {strides = array<i32>} : memref<1x2x128xf32, #tpu.memory_space<vmem>>, vector<1x1x128xf32>,
    return
  }
  func.func @transform_0(%arg0: i32) -> (i32, i32) {
    %c0_i32 = arith.constant 0 : i32
    %c0_i32_0 = arith.constant 0 : i32
    return %arg0, %c0_i32 : i32, i32
  }
  func.func @transform_1(%arg0: i32) -> (i32, i32) {
    %c0_i32 = arith.constant 0 : i32
    %c0_i32_0 = arith.constant 0 : i32
    %c0_i32_1 = arith.constant 0 : i32
    return %c0_i32, %c0_i32_0 : i32, i32
  }
  func.func @transform_2(%arg0: i32) -> (i32, i32) {
    %c0_i32 = arith.constant 0 : i32
    %c0_i32_0 = arith.constant 0 : i32
    return %arg0, %c0_i32 : i32, i32
  }
  func.func @transform_3(%arg0: i32) -> (i32, i32, i32) {
    %c0_i32 = arith.constant 0 : i32
    %c0_i32_0 = arith.constant 0 : i32
    %c0_i32_1 = arith.constant 0 : i32
    return %arg0, %c0_i32, %c0_i32_0 : i32, i32, i32
  }
}

module attributes {stable_mosaic.version = 11 : i64} {
  func.func @_bn_relu_kernel(%arg0: i32, %arg1: memref<32x128xbf16, #tpu.memory_space<vmem>>, %arg2: memref<2x128xf32, #tpu.memory_space<vmem>>, %arg3: memref<32x128xf32, #tpu.memory_space<vmem>>) attributes {dimension_semantics = [#tpu.dimension_semantics<parallel>], iteration_bounds = array<i64: 1>, scalar_prefetch = 0 : i64, scratch_operands = 0 : i64, tpu.core_type = #tpu.core_type<tc>, window_params = [{transform_indices = @transform_0, window_bounds = array<i64: 32, 128>}, {pipeline_mode = #tpu.pipeline_mode<synchronous>, transform_indices = @transform_1, window_bounds = array<i64: 2, 128>}, {transform_indices = @transform_2, window_bounds = array<i64: 32, 128>}]} {
    %c0 = arith.constant 0 : index
    %c0_0 = arith.constant 0 : index
    %0 = vector.load %arg1[%c0, %c0_0] : memref<32x128xbf16, #tpu.memory_space<vmem>>, vector<32x128xbf16>
    %1 = arith.extf %0 : vector<32x128xbf16> to vector<32x128xf32>
    %c0_1 = arith.constant 0 : index
    %c0_2 = arith.constant 0 : index
    %2 = vector.load %arg2[%c0_1, %c0_2] : memref<2x128xf32, #tpu.memory_space<vmem>>, vector<1x128xf32>
    %3 = vector.broadcast %2 : vector<1x128xf32> to vector<32x128xf32>
    %4 = arith.mulf %1, %3 : vector<32x128xf32>
    %c1 = arith.constant 1 : index
    %c0_3 = arith.constant 0 : index
    %5 = vector.load %arg2[%c1, %c0_3] : memref<2x128xf32, #tpu.memory_space<vmem>>, vector<1x128xf32>
    %6 = vector.broadcast %5 : vector<1x128xf32> to vector<32x128xf32>
    %7 = arith.addf %4, %6 : vector<32x128xf32>
    %cst = arith.constant 0.000000e+00 : f32
    %8 = vector.broadcast %cst : f32 to vector<32x128xf32>
    %9 = arith.maximumf %7, %8 : vector<32x128xf32>
    %c0_4 = arith.constant 0 : index
    %c0_5 = arith.constant 0 : index
    %10 = vector.load %arg3[%c0_4, %c0_5] : memref<32x128xf32, #tpu.memory_space<vmem>>, vector<32x128xf32>
    tpu.vector_store %arg3[%c0_4, %c0_5], %9 {strides = array<i32>} : memref<32x128xf32, #tpu.memory_space<vmem>>, vector<32x128xf32>,
    return
  }
  func.func @transform_0(%arg0: i32) -> (i32, i32) {
    %c0_i32 = arith.constant 0 : i32
    %c0_i32_0 = arith.constant 0 : i32
    return %arg0, %c0_i32 : i32, i32
  }
  func.func @transform_1(%arg0: i32) -> (i32, i32) {
    %c0_i32 = arith.constant 0 : i32
    %c0_i32_0 = arith.constant 0 : i32
    %c0_i32_1 = arith.constant 0 : i32
    return %c0_i32, %c0_i32_0 : i32, i32
  }
  func.func @transform_2(%arg0: i32) -> (i32, i32) {
    %c0_i32 = arith.constant 0 : i32
    %c0_i32_0 = arith.constant 0 : i32
    return %arg0, %c0_i32 : i32, i32
  }
}

</mosaic_0001>

<llo_original>
// kernel: tile.13
$region0: #{tile.13}
  #allocation0 [shape = 's32[1]{0}', space=sflag, size = 0x4, scoped, tag = 'scoped memory for tile.13']
  %s0 = inlined_call_operand.vmem [shape: f32[8], index: 0, kind: input, shape index: {}]
  %s1 = inlined_call_operand.vmem [shape: f32[16,8], index: 1, kind: output, shape index: {}]
  // Predicated region
  $region2: #{tile.13} parent=0 // pred_check
    _
  $region3: #{tile.13} parent=0 // pred_check_branch
    %3 = sbr.rel (0) target = $region5
  $region4: #{tile.13} parent=0 // pred_region
    _
  $region5: #{tile.13} parent=0 // pred_fallthru
    _
  %v4 = vld [vmem:[%s0] ss:$0 sm:$0xff]
  %5 = vst [vmem:[%s1] sm:$0xff] %v4
  %s6 = scalar_lea.vmem %s1, 8
  %7 = vst [vmem:[%s6] sm:$0xff] %v4

// kernel: tile.18
$region0: #{tile.18}
  %s0 = inlined_call_operand.vmem [shape: f32[16,8], index: 0, kind: input, shape index: {}]
  %s1 = inlined_call_operand.vmem [shape: f32[1,128], index: 1, kind: output, shape index: {}]
  $region1: #{tile.18} parent=0
    #allocation0 [shape = 'u8[4096]{0}', space=vmem, size = 0x1000, scoped, tag = 'scoped mem for output reshape']
    %v2 = vld [vmem:[%s0] sm:$0x1]
    %vm3 = vcmask 64512
    %4 = vst.msk [vmem:[#allocation0] sm:$0x1] %vm3, %v2
    %s5 = scalar_lea.vmem %s0, 15
    %v6 = vld [vmem:[%s5] sm:$0x1]
    %7 = vrot.lane.b32.xlu0 %v6, 120
    %v8 = vpop.permute.xlu0 %7
    %vm9 = vcmask 1048512
    %10 = vst.msk [vmem:[#allocation0] sm:$0x1] %vm9, %v8
    %s11 = scalar_lea.vmem %s0, 14
    %v12 = vld [vmem:[%s11] sm:$0x1]
    %13 = vrot.lane.b32.xlu0 %v12, 112
    %v14 = vpop.permute.xlu0 %13
    %vm15 = vcmask 982912
    %16 = vst.msk [vmem:[#allocation0] sm:$0x1] %vm15, %v14
    %s17 = scalar_lea.vmem %s0, 13
    %v18 = vld [vmem:[%s17] sm:$0x1]
    %19 = vrot.lane.b32.xlu0 %v18, 104
    %v20 = vpop.permute.xlu0 %19
    %vm21 = vcmask 917312
    %22 = vst.msk [vmem:[#allocation0] sm:$0x1] %vm21, %v20
    %s23 = scalar_lea.vmem %s0, 12
    %v24 = vld [vmem:[%s23] sm:$0x1]
    %25 = vrot.lane.b32.xlu0 %v24, 96
    %v26 = vpop.permute.xlu0 %25
    %vm27 = vcmask 851712
    %28 = vst.msk [vmem:[#allocation0] sm:$0x1] %vm27, %v26
    %s29 = scalar_lea.vmem %s0, 11
    %v30 = vld [vmem:[%s29] sm:$0x1]
    %31 = vrot.lane.b32.xlu0 %v30, 88
    %v32 = vpop.permute.xlu0 %31
    %vm33 = vcmask 786112
    %34 = vst.msk [vmem:[#allocation0] sm:$0x1] %vm33, %v32
    %s35 = scalar_lea.vmem %s0, 10
    %v36 = vld [vmem:[%s35] sm:$0x1]
    %37 = vrot.lane.b32.xlu0 %v36, 80
    %v38 = vpop.permute.xlu0 %37
    %vm39 = vcmask 720512
    %40 = vst.msk [vmem:[#allocation0] sm:$0x1] %vm39, %v38
    %s41 = scalar_lea.vmem %s0, 9
    %v42 = vld [vmem:[%s41] sm:$0x1]
    %43 = vrot.lane.b32.xlu0 %v42, 72
    %v44 = vpop.permute.xlu0 %43
    %vm45 = vcmask 654912
    %46 = vst.msk [vmem:[#allocation0] sm:$0x1] %vm45, %v44
    %s47 = scalar_lea.vmem %s0, 8
    %v48 = vld [vmem:[%s47] sm:$0x1]
    %49 = vrot.lane.b32.xlu0 %v48, 64
    %v50 = vpop.permute.xlu0 %49
    %vm51 = vcmask 589312
    %52 = vst.msk [vmem:[#allocation0] sm:$0x1] %vm51, %v50
    %s53 = scalar_lea.vmem %s0, 7
    %v54 = vld [vmem:[%s53] sm:$0x1]
    %55 = vrot.lane.b32.xlu0 %v54, 56
    %v56 = vpop.permute.xlu0 %55
    %vm57 = vcmask 523712
    %58 = vst.msk [vmem:[#allocation0] sm:$0x1] %vm57, %v56
    %s59 = scalar_lea.vmem %s0, 6
    %v60 = vld [vmem:[%s59] sm:$0x1]
    %61 = vrot.lane.b32.xlu0 %v60, 48
    %v62 = vpop.permute.xlu0 %61
    %vm63 = vcmask 458112
    %64 = vst.msk [vmem:[#allocation0] sm:$0x1] %vm63, %v62
    %s65 = scalar_lea.vmem %s0, 5
    %v66 = vld [vmem:[%s65] sm:$0x1]
    %67 = vrot.lane.b32.xlu0 %v66, 40
    %v68 = vpop.permute.xlu0 %67
    %vm69 = vcmask 392512
    %70 = vst.msk [vmem:[#allocation0] sm:$0x1] %vm69, %v68
    %s71 = scalar_lea.vmem %s0, 4
    %v72 = vld [vmem:[%s71] sm:$0x1]
    %73 = vrot.lane.b32.xlu0 %v72, 32
    %v74 = vpop.permute.xlu0 %73
    %vm75 = vcmask 326912
    %76 = vst.msk [vmem:[#allocation0] sm:$0x1] %vm75, %v74
    %s77 = scalar_lea.vmem %s0, 3
    %v78 = vld [vmem:[%s77] sm:$0x1]
    %79 = vrot.lane.b32.xlu0 %v78, 24
    %v80 = vpop.permute.xlu0 %79
    %vm81 = vcmask 261312
    %82 = vst.msk [vmem:[#allocation0] sm:$0x1] %vm81, %v80
    %s83 = scalar_lea.vmem %s0, 2
    %v84 = vld [vmem:[%s83] sm:$0x1]
    %85 = vrot.lane.b32.xlu0 %v84, 16
    %v86 = vpop.permute.xlu0 %85
    %vm87 = vcmask 195712
    %88 = vst.msk [vmem:[#allocation0] sm:$0x1] %vm87, %v86
    %s89 = scalar_lea.vmem %s0, 1
    %v90 = vld [vmem:[%s89] sm:$0x1]
    %91 = vrot.lane.b32.xlu0 %v90, 8
    %v92 = vpop.permute.xlu0 %91
    %vm93 = vcmask 130112
    %94 = vst.msk [vmem:[#allocation0] sm:$0x1] %vm93, %v92
    %s96 = sshll.u32 1, 1
    %s97 = ssub.s32 %s96, 1
    %v99 = vld [vmem:[#allocation0] sm:%s97]
    %s100 = sshll.u32 1, 1
    %s101 = ssub.s32 %s100, 1
    %102 = vst [vmem:[%s1] sm:%s101] %v99

// kernel: gated_conv_forward.3
$region0: #{gated_conv_forward.3}
  #allocation0 [shape = 'u32[]', space=smem, size = 0x4, offset = 0x4, fixed_abs, tag = 'smem constant byte address 0x4 - core index']
  #allocation1 [shape = 'u32[144,128]{1,0:T(1,128)}', space=vmem, size = 0x12000, scoped, tag = 'internal scratch']
  %s0 = inlined_call_operand.vmem [shape: bf16[32,128], index: 0, kind: input, shape index: {}]
  %s1 = inlined_call_operand.vmem [shape: f32[2,128], index: 1, kind: input, shape index: {}]
  %s2 = inlined_call_operand.vmem [shape: f32[32,128], index: 2, kind: output, shape index: {}]
  %s3 = sld [smem:[#allocation0]]
  $region18: #{gated_conv_forward.3} parent=0
    _
  %s5 = ssub.s32 1, %s3
  %s6 = scalar_select 0, %s5, %s3
  // Predicated region
  $region2: #{gated_conv_forward.3} parent=0 // pred_check
    _
  $region3: #{gated_conv_forward.3} parent=0 // pred_check_branch
    %8 = sbr.rel (0) target = $region5
  $region4: #{gated_conv_forward.3} parent=0 // pred_region
    _
  $region5: #{gated_conv_forward.3} parent=0 // pred_fallthru
    _
  // Predicated region
  $region6: #{gated_conv_forward.3} parent=0 // pred_check
    _
  $region7: #{gated_conv_forward.3} parent=0 // pred_check_branch
    %10 = sbr.rel (0) target = $region9
  $region8: #{gated_conv_forward.3} parent=0 // pred_region
    _
  $region9: #{gated_conv_forward.3} parent=0 // pred_fallthru
    _
  %v11 = vld [vmem:[%s0] sm:$0xf]
  %v12 = vld [vmem:[%s0 + $0x4] sm:$0xf]
  %v13 = vld [vmem:[%s0 + $0x8] sm:$0xf]
  %v14 = vld [vmem:[%s0 + $0xc] sm:$0xf]
  %v15 = vunpack.c.l.bf16 %v11
  %v16 = vunpack.c.l.bf16 %v12
  %v17 = vunpack.c.l.bf16 %v13
  %v18 = vunpack.c.l.bf16 %v14
  %v19 = vld [vmem:[%s1] sm:$0x1]
  %v20 = vlaneseq
  %v21 = vshrl.u32 %v20, 7
  %v22 = vsub.s32 0, %v21
  %v23 = vrot.slane %v19, %v22
  %v24 = vmul.f32 %v15, %v23
  %v25 = vmul.f32 %v16, %v23
  %v26 = vmul.f32 %v17, %v23
  %v27 = vmul.f32 %v18, %v23
  %v28 = vld [vmem:[%s1 + $0x1] sm:$0x1]
  %v29 = vlaneseq
  %v30 = vshrl.u32 %v29, 7
  %v31 = vsub.s32 0, %v30
  %v32 = vrot.slane %v28, %v31
  %v33 = vadd.f32 %v24, %v32
  %v34 = vadd.f32 %v25, %v32
  %v35 = vadd.f32 %v26, %v32
  %v36 = vadd.f32 %v27, %v32
  %v37 = vmax.f32 %v33, 0.0
  %v38 = vmax.f32 %v34, 0.0
  %v39 = vmax.f32 %v35, 0.0
  %v40 = vmax.f32 %v36, 0.0
  %41 = vst [vmem:[%s2] sm:$0xff] %v37
  %42 = vst [vmem:[%s2 + $0x8] sm:$0xff] %v38
  %43 = vst [vmem:[%s2 + $0x10] sm:$0xff] %v39
  %44 = vst [vmem:[%s2 + $0x18] sm:$0xff] %v40
  // Predicated region
  $region10: #{gated_conv_forward.3} parent=0 // pred_check
    _
  $region11: #{gated_conv_forward.3} parent=0 // pred_check_branch
    %46 = sbr.rel (0) target = $region13
  $region12: #{gated_conv_forward.3} parent=0 // pred_region
    _
  $region13: #{gated_conv_forward.3} parent=0 // pred_fallthru
    _
  // Predicated region
  $region14: #{gated_conv_forward.3} parent=0 // pred_check
    _
  $region15: #{gated_conv_forward.3} parent=0 // pred_check_branch
    %48 = sbr.rel (0) target = $region17
  $region16: #{gated_conv_forward.3} parent=0 // pred_region
    _
  $region17: #{gated_conv_forward.3} parent=0 // pred_fallthru
    _

// kernel: gated_conv_forward.2
$region0: #{gated_conv_forward.2}
  #allocation0 [shape = 'u32[]', space=smem, size = 0x4, offset = 0x4, fixed_abs, tag = 'smem constant byte address 0x4 - core index']
  #allocation1 [shape = 'u32[144,128]{1,0:T(1,128)}', space=vmem, size = 0x12000, scoped, tag = 'internal scratch']
  %s0 = inlined_call_operand.vmem [shape: bf16[32,216], index: 0, kind: input, shape index: {}]
  %s1 = inlined_call_operand.vmem [shape: bf16[216,128], index: 1, kind: input, shape index: {}]
  %s2 = inlined_call_operand.vmem [shape: bf16[32,128], index: 2, kind: output, shape index: {0}]
  %s3 = inlined_call_operand.vmem [shape: f32[1,2,128], index: 3, kind: output, shape index: {1}]
  %4 = xla_tuple %s2, %s3
  %s5 = sld [smem:[#allocation0]]
  $region26: #{gated_conv_forward.2} parent=0
    _
  %s7 = ssub.s32 1, %s5
  %s8 = scalar_select 0, %s7, %s5
  // Predicated region
  $region2: #{gated_conv_forward.2} parent=0 // pred_check
    _
  $region3: #{gated_conv_forward.2} parent=0 // pred_check_branch
    %10 = sbr.rel (0) target = $region5
  $region4: #{gated_conv_forward.2} parent=0 // pred_region
    _
  $region5: #{gated_conv_forward.2} parent=0 // pred_fallthru
    _
  // Predicated region
  $region6: #{gated_conv_forward.2} parent=0 // pred_check
    _
  $region7: #{gated_conv_forward.2} parent=0 // pred_check_branch
    %12 = sbr.rel (0) target = $region9
  $region8: #{gated_conv_forward.2} parent=0 // pred_region
    _
  $region9: #{gated_conv_forward.2} parent=0 // pred_fallthru
    _
  %v14 = vld [vmem:[%s0] sm:$0xff]
  %v15 = vld [vmem:[%s0 + $0x8] sm:$0xff]
  %v16 = vld [vmem:[%s0 + $0x10] sm:$0xff]
  %v17 = vld [vmem:[%s0 + $0x18] sm:$0xff]
  %v18 = vld [vmem:[%s1] sm:$0xf]
  %v19 = vld [vmem:[%s1 + $0x4] sm:$0xf]
  %v20 = vld [vmem:[%s1 + $0x8] sm:$0xf]
  %v21 = vld [vmem:[%s1 + $0xc] sm:$0xf]
  %v22 = vld [vmem:[%s1 + $0x10] sm:$0xf]
  %v23 = vld [vmem:[%s1 + $0x14] sm:$0xf]
  %v24 = vld [vmem:[%s1 + $0x18] sm:$0xf]
  %v25 = vld [vmem:[%s1 + $0x1c] sm:$0xf]
  %v26 = vld [vmem:[%s1 + $0x20] sm:$0xf]
  %v27 = vld [vmem:[%s1 + $0x24] sm:$0xf]
  %v28 = vld [vmem:[%s1 + $0x28] sm:$0xf]
  %v29 = vld [vmem:[%s1 + $0x2c] sm:$0xf]
  %v30 = vld [vmem:[%s1 + $0x30] sm:$0xf]
  %v31 = vld [vmem:[%s1 + $0x34] sm:$0xf]
  %v32 = vld [vmem:[%s1 + $0x38] sm:$0xf]
  %v33 = vld [vmem:[%s1 + $0x3c] sm:$0xf]
  %v34 = vld [vmem:[%s1 + $0x40] sm:$0xf]
  %v35 = vld [vmem:[%s1 + $0x44] sm:$0xf]
  %v36 = vld [vmem:[%s1 + $0x48] sm:$0xf]
  %v37 = vld [vmem:[%s1 + $0x4c] sm:$0xf]
  %v38 = vld [vmem:[%s1 + $0x50] sm:$0xf]
  %v39 = vld [vmem:[%s1 + $0x54] sm:$0xf]
  %v40 = vld [vmem:[%s1 + $0x58] sm:$0xf]
  %v41 = vld [vmem:[%s1 + $0x5c] sm:$0xf]
  %v42 = vld [vmem:[%s1 + $0x60] sm:$0xf]
  %v43 = vld [vmem:[%s1 + $0x64] sm:$0xf]
  %v44 = vld [vmem:[%s1 + $0x68] sm:$0xf]
  %v49 = vunpack.c.l.b16 %v14
  %v50 = vunpack.c.h.b16 %v14
  %v51 = vunpack.c.l.b16 %v15
  %v52 = vunpack.c.h.b16 %v15
  %v53 = vunpack.c.l.b16 %v16
  %v54 = vunpack.c.h.b16 %v16
  %v55 = vunpack.c.l.b16 %v17
  %v56 = vunpack.c.h.b16 %v17
  %v57 = vpack.c.b16 %v51, %v49
  %v58 = vpack.c.b16 %v52, %v50
  %v59 = vpack.c.b16 %v55, %v53
  %v60 = vpack.c.b16 %v56, %v54
  %v90 = vunpack.c.l.b16 %v18
  %v91 = vunpack.c.l.b16 %v19
  %v92 = vunpack.c.l.b16 %v20
  %v93 = vunpack.c.l.b16 %v21
  %v94 = vunpack.c.l.b16 %v22
  %v95 = vunpack.c.l.b16 %v23
  %v96 = vunpack.c.l.b16 %v24
  %v97 = vunpack.c.l.b16 %v25
  %v98 = vunpack.c.l.b16 %v26
  %v99 = vunpack.c.l.b16 %v27
  %v100 = vunpack.c.l.b16 %v28
  %v101 = vunpack.c.l.b16 %v29
  %v102 = vunpack.c.l.b16 %v30
  %v103 = vunpack.c.l.b16 %v31
  %v104 = vunpack.c.l.b16 %v32
  %v105 = vunpack.c.l.b16 %v33
  %v106 = vunpack.c.l.b16 %v34
  %v107 = vunpack.c.l.b16 %v35
  %v108 = vunpack.c.l.b16 %v36
  %v109 = vunpack.c.l.b16 %v37
  %v110 = vunpack.c.l.b16 %v38
  %v111 = vunpack.c.l.b16 %v39
  %v112 = vunpack.c.l.b16 %v40
  %v113 = vunpack.c.l.b16 %v41
  %v114 = vunpack.c.l.b16 %v42
  %v115 = vunpack.c.l.b16 %v43
  %v116 = vunpack.c.l.b16 %v44
  %v117 = vpack.c.b16 %v91, %v90
  %v118 = vpack.c.b16 %v93, %v92
  %v119 = vpack.c.b16 %v95, %v94
  %v120 = vpack.c.b16 %v97, %v96
  %v121 = vpack.c.b16 %v99, %v98
  %v122 = vpack.c.b16 %v101, %v100
  %v123 = vpack.c.b16 %v103, %v102
  %v124 = vpack.c.b16 %v105, %v104
  %v125 = vpack.c.b16 %v107, %v106
  %v126 = vpack.c.b16 %v109, %v108
  %v127 = vpack.c.b16 %v111, %v110
  %v128 = vpack.c.b16 %v113, %v112
  %v129 = vpack.c.b16 %v115, %v114
  %v130 = vpack.c.b16 %v116, %v116
  %vm144 = vcmask 719872
  %v146 = vsel %vm144, %v58, 0
  %v149 = vsel %vm144, %v60, 0
  %vm151 = vcmask 1043456
  %v153 = vsel %vm151, %v130, 0
  %155 = vmatprep.subr.bf16.mxu0 0
  %156 = vmatpush1.bf16.msra.mxu0 %v124
  %157 = vmatprep.subr.bf16.mxu0 0
  %158 = vmatpush1.bf16.msra.mxu0 %v123
  %159 = vmatprep.subr.bf16.mxu0 0
  %160 = vmatpush1.bf16.msra.mxu0 %v122
  %161 = vmatprep.subr.bf16.mxu0 0
  %162 = vmatpush1.bf16.msra.mxu0 %v121
  %163 = vmatprep.subr.bf16.mxu0 0
  %164 = vmatpush1.bf16.msra.mxu0 %v120
  %165 = vmatprep.subr.bf16.mxu0 0
  %166 = vmatpush1.bf16.msra.mxu0 %v119
  %167 = vmatprep.subr.bf16.mxu0 0
  %168 = vmatpush1.bf16.msra.mxu0 %v118
  %169 = vmatprep.subr.bf16.mxu0 0
  %170 = vmatpush1.bf16.msra.mxu0 %v117
  %171 = vmatprep.subr.bf16.mxu0 0
  %172 = vmatpush2.bf16.msra.mxu0 0
  %173 = vmatprep.subr.bf16.mxu0 0
  %174 = vmatpush2.bf16.msra.mxu0 0
  %175 = vmatprep.subr.bf16.mxu0 0
  %176 = vmatpush2.bf16.msra.mxu0 %v153
  %177 = vmatprep.subr.bf16.mxu0 0
  %178 = vmatpush2.bf16.msra.mxu0 %v129
  %179 = vmatprep.subr.bf16.mxu0 0
  %180 = vmatpush2.bf16.msra.mxu0 %v128
  %181 = vmatprep.subr.bf16.mxu0 0
  %182 = vmatpush2.bf16.msra.mxu0 %v127
  %183 = vmatprep.subr.bf16.mxu0 0
  %184 = vmatpush2.bf16.msra.mxu0 %v126
  %185 = vmatprep.subr.bf16.mxu0 0
  %186 = vmatpush2.bf16.msra.mxu0 %v125
  %187 = vmatprep.mubr.bf16.mxu0 %v146
  %188 = vmatmul.mubr.bf16.gmra.mxu0 %v57
  %v189 = vpop.f32.mrf.mxu0
  %v190 = vadd.f32 0.0, %v189
  %v191 = vpop.f32.mrf.mxu0
  %v192 = vpop.f32.mrf.mxu0
  %v193 = vadd.f32 0.0, %v192
  %v194 = vpop.f32.mrf.mxu0
  %195 = vmatprep.mubr.bf16.mxu0 %v149
  %196 = vmatmul.mubr.bf16.gmra.mxu0 %v59
  %v197 = vpop.f32.mrf.mxu0
  %v198 = vadd.f32 0.0, %v197
  %v199 = vpop.f32.mrf.mxu0
  %v200 = vpop.f32.mrf.mxu0
  %v201 = vadd.f32 0.0, %v200
  %v202 = vpop.f32.mrf.mxu0
  %203 = vdwg.mxu0
  %v204 = vpack.c.bf16 %v193, %v190
  %v205 = vpack.c.bf16 %v201, %v198
  %v208 = vunpack.c.l.b16 %v204
  %v209 = vunpack.c.h.b16 %v204
  %v210 = vunpack.c.l.b16 %v205
  %v211 = vunpack.c.h.b16 %v205
  %v212 = vpack.c.b16 %v208, %v208
  %v213 = vpack.c.b16 %v209, %v209
  %v214 = vpack.c.b16 %v210, %v210
  %v215 = vpack.c.b16 %v211, %v211
  %220 = vst [vmem:[%s2] sm:$0xf] %v212
  %221 = vst [vmem:[%s2 + $0x4] sm:$0xf] %v213
  %222 = vst [vmem:[%s2 + $0x8] sm:$0xf] %v214
  %223 = vst [vmem:[%s2 + $0xc] sm:$0xf] %v215
  %v224 = vadd.f32 %v190, %v193
  %v225 = vadd.f32 %v224, %v198
  %v226 = vadd.f32 %v225, %v201
  %v227 = vrot.slane %v226, 4
  %v228 = vadd.f32 %v226, %v227
  %v229 = vrot.slane %v228, 2
  %v230 = vadd.f32 %v228, %v229
  %v231 = vrot.slane %v230, 1
  %v232 = vadd.f32 %v230, %v231
  %233 = vst [vmem:[%s3] sm:$0x1] %v232
  %v234 = vmul.f32 %v190, %v190
  %v235 = vmul.f32 %v193, %v193
  %v236 = vmul.f32 %v198, %v198
  %v237 = vmul.f32 %v201, %v201
  %v238 = vadd.f32 %v234, %v235
  %v239 = vadd.f32 %v238, %v236
  %v240 = vadd.f32 %v239, %v237
  %v241 = vrot.slane %v240, 4
  %v242 = vadd.f32 %v240, %v241
  %v243 = vrot.slane %v242, 2
  %v244 = vadd.f32 %v242, %v243
  %v245 = vrot.slane %v244, 1
  %v246 = vadd.f32 %v244, %v245
  %247 = vst [vmem:[%s3 + $0x1] sm:$0x1] %v246
  // Predicated region
  $region10: #{gated_conv_forward.2} parent=0 // pred_check
    _
  $region11: #{gated_conv_forward.2} parent=0 // pred_check_branch
    %249 = sbr.rel (0) target = $region13
  $region12: #{gated_conv_forward.2} parent=0 // pred_region
    _
  $region13: #{gated_conv_forward.2} parent=0 // pred_fallthru
    _
  // Predicated region
  $region14: #{gated_conv_forward.2} parent=0 // pred_check
    _
  $region15: #{gated_conv_forward.2} parent=0 // pred_check_branch
    %251 = sbr.rel (0) target = $region17
  $region16: #{gated_conv_forward.2} parent=0 // pred_region
    _
  $region17: #{gated_conv_forward.2} parent=0 // pred_fallthru
    _
  // Predicated region
  $region18: #{gated_conv_forward.2} parent=0 // pred_check
    _
  $region19: #{gated_conv_forward.2} parent=0 // pred_check_branch
    %253 = sbr.rel (0) target = $region21
  $region20: #{gated_conv_forward.2} parent=0 // pred_region
    _
  $region21: #{gated_conv_forward.2} parent=0 // pred_fallthru
    _
  // Predicated region
  $region22: #{gated_conv_forward.2} parent=0 // pred_check
    _
  $region23: #{gated_conv_forward.2} parent=0 // pred_check_branch
    %255 = sbr.rel (0) target = $region25
  $region24: #{gated_conv_forward.2} parent=0 // pred_region
    _
  $region25: #{gated_conv_forward.2} parent=0 // pred_fallthru
    _

</llo_original>
